<compile_context>
chip_gen: v7x
topology: tpu7x:2x2x1
jax: 0.10.0
libtpu: 0.0.40
codegen_flags: <defaults>
</compile_context>

<pallas_src>
import functools

import numpy as np
import jax
import jax.numpy as jnp
from jax import lax
from jax.experimental import pallas as pl
from jax.experimental.pallas import tpu as pltpu


def _filter_low_kernel(x_ref, mask_ref, o_ref, buf_ref, *, H, W, k, recursions):
    pad = (k - 1) // 2
    HW = H * W
    c = pad * W                          # halo width on each side of the flat axis
    tb = x_ref.shape[0]

    # Zero the halo strips (the center region is always overwritten below).
    buf_ref[:, :c] = jnp.zeros((tb, c), jnp.float32)
    buf_ref[:, c + HW:] = jnp.zeros((tb, c), jnp.float32)

    cur = x_ref[...].astype(jnp.float32)             # single cast per tile
    inv = 1.0 / float(k * k)                         # count_include_pad=True divisor

    for _ in range(recursions):                      # fused recursions, stay in VMEM
        # ---- horizontal 1 x k pass (lane-axis taps; row wrap masked out) ----
        buf_ref[:, c:c + HW] = cur
        h = cur
        for m in range(1, pad + 1):
            plus = buf_ref[:, c + m:c + m + HW]      # x[row, col+m] (wraps rows)
            minus = buf_ref[:, c - m:c - m + HW]     # x[row, col-m]
            h = h + plus * mask_ref[2 * (m - 1):2 * m - 1, :] \
                  + minus * mask_ref[2 * m - 1:2 * m, :]
        # ---- vertical k x 1 pass: taps are +/- m*W on the flat axis; the halo
        #      zeros provide exact zero padding, so no mask is needed. ----
        buf_ref[:, c:c + HW] = h
        v = h
        for m in range(1, pad + 1):
            v = v + buf_ref[:, c + m * W:c + m * W + HW] \
                  + buf_ref[:, c - m * W:c - m * W + HW]
        cur = v * inv

    o_ref[...] = cur.astype(o_ref.dtype)


def _pick_block_rows(nc, hw):
    # ~2 MiB per block buffer keeps (in+out) double buffers + f32 scratch well
    # under the scoped-VMEM defaults on v5e (16 MiB) and v6e/v7x (32 MiB).
    budget = 2 * 1024 * 1024
    tb = max(1, min(nc, budget // max(hw * 4, 1)))
    # v7x has 2 TensorCores: prefer >= 2 grid steps when there is enough work.
    if tb == nc and nc >= 16:
        tb = (nc + 1) // 2
    if 8 <= tb < nc:
        tb -= tb % 8                     # keep partial blocks sublane-aligned
    return max(tb, 1)


def filter_low(img, recursions=1, kernel_size=5, stride=1, padding=True,
               include_pad=True):
    """JAX/Pallas equivalent of FilterLow.forward (gaussian=False default)."""
    assert stride == 1 and include_pad and padding and kernel_size % 2 == 1, (
        "kernel covers the default FilterLow config (odd kernel, stride 1, "
        "same-size padding, count_include_pad=True)")
    # TODO(synk): very large images (H*W*4B per slice beyond a few MiB) would
    # need H-strip mining with a (k-1)-row halo instead of whole-slice rows.
    k = kernel_size
    pad = (k - 1) // 2
    if pad == 0:
        return img                       # k == 1 is the identity filter
    N, C, H, W = img.shape
    NC, HW = N * C, H * W
    x2 = img.reshape(NC, HW)             # free: row-major contiguous view

    # Precomputed 0/1 masks killing the row-boundary wrap of the +/-m lane taps.
    col = np.arange(HW) % W
    rows = []
    for m in range(1, pad + 1):
        rows.append(col < (W - m))       # valid positions for the +m tap
        rows.append(col >= m)            # valid positions for the -m tap
    masks = jnp.asarray(np.stack(rows).astype(np.float32))   # (2*pad, HW)

    tb = _pick_block_rows(NC, HW)
    grid = (pl.cdiv(NC, tb),)
    kernel = functools.partial(_filter_low_kernel, H=H, W=W, k=k,
                               recursions=recursions)

    itemsize = jnp.dtype(img.dtype).itemsize
    cost = pl.CostEstimate(
        flops=2 * recursions * k * k * NC * HW,
        transcendentals=0,
        bytes_accessed=2 * NC * HW * itemsize + masks.size * 4,
    )

    out = pl.pallas_call(
        kernel,
        out_shape=jax.ShapeDtypeStruct((NC, HW), img.dtype),
        grid_spec=pltpu.PrefetchScalarGridSpec(
            num_scalar_prefetch=0,
            grid=grid,
            in_specs=[
                pl.BlockSpec((tb, HW), lambda i: (i, 0)),
                pl.BlockSpec((2 * pad, HW), lambda i: (0, 0)),
            ],
            out_specs=pl.BlockSpec((tb, HW), lambda i: (i, 0)),
            scratch_shapes=[pltpu.VMEM((tb, HW + 2 * pad * W), jnp.float32)],
        ),
        compiler_params=pltpu.CompilerParams(
            dimension_semantics=("parallel",),
            vmem_limit_bytes=32 * 1024 * 1024,
        ),
        cost_estimate=cost,
    )(x2, masks)
    return out.reshape(N, C, H, W)


def _reference(img, k=5, recursions=1):
    pad = (k - 1) // 2
    out = img
    for _ in range(recursions):
        s = lax.reduce_window(
            out, 0.0, lax.add,
            window_dimensions=(1, 1, k, k),
            window_strides=(1, 1, 1, 1),
            padding=((0, 0), (0, 0), (pad, pad), (pad, pad)),
        )
        out = s / float(k * k)
    return out


if __name__ == "__main__":
    key = jax.random.PRNGKey(0)
    x = jax.random.normal(key, (2, 4, 16, 16), dtype=jnp.float32)

    out1 = jax.block_until_ready(filter_low(x, recursions=1, kernel_size=5))
    ref1 = _reference(x, k=5, recursions=1)
    assert out1.shape == ref1.shape == (2, 4, 16, 16)
    assert float(jnp.max(jnp.abs(out1 - ref1))) < 1e-5

    # Fused multi-recursion path (stays in VMEM; one HBM read + one write).
    out2 = jax.block_until_ready(filter_low(x, recursions=2, kernel_size=5))
    ref2 = _reference(x, k=5, recursions=2)
    assert float(jnp.max(jnp.abs(out2 - ref2))) < 1e-4

    print("KERNEL_OK")
</pallas_src>

<mosaic_0001>
module attributes {stable_mosaic.version = 11 : i64} {
  func.func @_filter_low_kernel(%arg0: i32, %arg1: memref<8x256xf32, #tpu.memory_space<vmem>>, %arg2: memref<4x256xf32, #tpu.memory_space<vmem>>, %arg3: memref<8x256xf32, #tpu.memory_space<vmem>>, %arg4: memref<8x320xf32, #tpu.memory_space<vmem>>) attributes {dimension_semantics = [#tpu.dimension_semantics<parallel>], iteration_bounds = array<i64: 1>, scalar_prefetch = 0 : i64, scratch_operands = 1 : i64, tpu.core_type = #tpu.core_type<tc>, window_params = [{transform_indices = @transform_0, window_bounds = array<i64: 8, 256>}, {pipeline_mode = #tpu.pipeline_mode<synchronous>, transform_indices = @transform_1, window_bounds = array<i64: 4, 256>}, {transform_indices = @transform_2, window_bounds = array<i64: 8, 256>}]} {
    %cst = arith.constant 0.000000e+00 : f32
    %0 = vector.broadcast %cst : f32 to vector<8x32xf32>
    %c0 = arith.constant 0 : index
    %c0_0 = arith.constant 0 : index
    %1 = vector.load %arg4[%c0, %c0_0] : memref<8x320xf32, #tpu.memory_space<vmem>>, vector<8x32xf32>
    tpu.vector_store %arg4[%c0, %c0_0], %0 {strides = array<i32>} : memref<8x320xf32, #tpu.memory_space<vmem>>, vector<8x32xf32>,
    %cst_1 = arith.constant 0.000000e+00 : f32
    %2 = vector.broadcast %cst_1 : f32 to vector<8x32xf32>
    %c0_2 = arith.constant 0 : index
    %c288 = arith.constant 288 : index
    %3 = vector.load %arg4[%c0_2, %c288] : memref<8x320xf32, #tpu.memory_space<vmem>>, vector<8x32xf32>
    tpu.vector_store %arg4[%c0_2, %c288], %2 {strides = array<i32>} : memref<8x320xf32, #tpu.memory_space<vmem>>, vector<8x32xf32>,
    %c0_3 = arith.constant 0 : index
    %c0_4 = arith.constant 0 : index
    %4 = vector.load %arg1[%c0_3, %c0_4] : memref<8x256xf32, #tpu.memory_space<vmem>>, vector<8x256xf32>
    %c0_5 = arith.constant 0 : index
    %c32 = arith.constant 32 : index
    %5 = vector.load %arg4[%c0_5, %c32] : memref<8x320xf32, #tpu.memory_space<vmem>>, vector<8x256xf32>
    tpu.vector_store %arg4[%c0_5, %c32], %4 {strides = array<i32>} : memref<8x320xf32, #tpu.memory_space<vmem>>, vector<8x256xf32>,
    %c0_6 = arith.constant 0 : index
    %c33 = arith.constant 33 : index
    %6 = vector.load %arg4[%c0_6, %c33] : memref<8x320xf32, #tpu.memory_space<vmem>>, vector<8x256xf32>
    %c0_7 = arith.constant 0 : index
    %c31 = arith.constant 31 : index
    %7 = vector.load %arg4[%c0_7, %c31] : memref<8x320xf32, #tpu.memory_space<vmem>>, vector<8x256xf32>
    %c0_8 = arith.constant 0 : index
    %c0_9 = arith.constant 0 : index
    %8 = vector.load %arg2[%c0_8, %c0_9] : memref<4x256xf32, #tpu.memory_space<vmem>>, vector<1x256xf32>
    %9 = vector.broadcast %8 : vector<1x256xf32> to vector<8x256xf32>
    %10 = arith.mulf %6, %9 : vector<8x256xf32>
    %11 = arith.addf %4, %10 : vector<8x256xf32>
    %c1 = arith.constant 1 : index
    %c0_10 = arith.constant 0 : index
    %12 = vector.load %arg2[%c1, %c0_10] : memref<4x256xf32, #tpu.memory_space<vmem>>, vector<1x256xf32>
    %13 = vector.broadcast %12 : vector<1x256xf32> to vector<8x256xf32>
    %14 = arith.mulf %7, %13 : vector<8x256xf32>
    %15 = arith.addf %11, %14 : vector<8x256xf32>
    %c0_11 = arith.constant 0 : index
    %c34 = arith.constant 34 : index
    %16 = vector.load %arg4[%c0_11, %c34] : memref<8x320xf32, #tpu.memory_space<vmem>>, vector<8x256xf32>
    %c0_12 = arith.constant 0 : index
    %c30 = arith.constant 30 : index
    %17 = vector.load %arg4[%c0_12, %c30] : memref<8x320xf32, #tpu.memory_space<vmem>>, vector<8x256xf32>
    %c2 = arith.constant 2 : index
    %c0_13 = arith.constant 0 : index
    %18 = vector.load %arg2[%c2, %c0_13] : memref<4x256xf32, #tpu.memory_space<vmem>>, vector<1x256xf32>
    %19 = vector.broadcast %18 : vector<1x256xf32> to vector<8x256xf32>
    %20 = arith.mulf %16, %19 : vector<8x256xf32>
    %21 = arith.addf %15, %20 : vector<8x256xf32>
    %c3 = arith.constant 3 : index
    %c0_14 = arith.constant 0 : index
    %22 = vector.load %arg2[%c3, %c0_14] : memref<4x256xf32, #tpu.memory_space<vmem>>, vector<1x256xf32>
    %23 = vector.broadcast %22 : vector<1x256xf32> to vector<8x256xf32>
    %24 = arith.mulf %17, %23 : vector<8x256xf32>
    %25 = arith.addf %21, %24 : vector<8x256xf32>
    %c0_15 = arith.constant 0 : index
    %c32_16 = arith.constant 32 : index
    %26 = vector.load %arg4[%c0_15, %c32_16] : memref<8x320xf32, #tpu.memory_space<vmem>>, vector<8x256xf32>
    tpu.vector_store %arg4[%c0_15, %c32_16], %25 {strides = array<i32>} : memref<8x320xf32, #tpu.memory_space<vmem>>, vector<8x256xf32>,
    %c0_17 = arith.constant 0 : index
    %c48 = arith.constant 48 : index
    %27 = vector.load %arg4[%c0_17, %c48] : memref<8x320xf32, #tpu.memory_space<vmem>>, vector<8x256xf32>
    %28 = arith.addf %25, %27 : vector<8x256xf32>
    %c0_18 = arith.constant 0 : index
    %c16 = arith.constant 16 : index
    %29 = vector.load %arg4[%c0_18, %c16] : memref<8x320xf32, #tpu.memory_space<vmem>>, vector<8x256xf32>
    %30 = arith.addf %28, %29 : vector<8x256xf32>
    %c0_19 = arith.constant 0 : index
    %c64 = arith.constant 64 : index
    %31 = vector.load %arg4[%c0_19, %c64] : memref<8x320xf32, #tpu.memory_space<vmem>>, vector<8x256xf32>
    %32 = arith.addf %30, %31 : vector<8x256xf32>
    %c0_20 = arith.constant 0 : index
    %c0_21 = arith.constant 0 : index
    %33 = vector.load %arg4[%c0_20, %c0_21] : memref<8x320xf32, #tpu.memory_space<vmem>>, vector<8x256xf32>
    %34 = arith.addf %32, %33 : vector<8x256xf32>
    %cst_22 = arith.constant 4.000000e-02 : f32
    %35 = vector.broadcast %cst_22 : f32 to vector<8x256xf32>
    %36 = arith.mulf %34, %35 : vector<8x256xf32>
    %c0_23 = arith.constant 0 : index
    %c0_24 = arith.constant 0 : index
    %37 = vector.load %arg3[%c0_23, %c0_24] : memref<8x256xf32, #tpu.memory_space<vmem>>, vector<8x256xf32>
    tpu.vector_store %arg3[%c0_23, %c0_24], %36 {strides = array<i32>} : memref<8x256xf32, #tpu.memory_space<vmem>>, vector<8x256xf32>,
    return
  }
  func.func @transform_0(%arg0: i32) -> (i32, i32) {
    %c0_i32 = arith.constant 0 : i32
    %c0_i32_0 = arith.constant 0 : i32
    return %arg0, %c0_i32 : i32, i32
  }
  func.func @transform_1(%arg0: i32) -> (i32, i32) {
    %c0_i32 = arith.constant 0 : i32
    %c0_i32_0 = arith.constant 0 : i32
    %c0_i32_1 = arith.constant 0 : i32
    return %c0_i32, %c0_i32_0 : i32, i32
  }
  func.func @transform_2(%arg0: i32) -> (i32, i32) {
    %c0_i32 = arith.constant 0 : i32
    %c0_i32_0 = arith.constant 0 : i32
    return %arg0, %c0_i32 : i32, i32
  }
}

</mosaic_0001>

<llo_original>
// kernel: tpu_custom_call.1
$region0: #{tpu_custom_call.1}
  #allocation0 [shape = 'u32[]', space=smem, size = 0x4, offset = 0x4, fixed_abs, tag = 'smem constant byte address 0x4 - core index']
  #allocation1 [shape = 'u32[144,128]{1,0:T(1,128)}', space=vmem, size = 0x12000, scoped, tag = 'internal scratch']
  #allocation2 [shape = 'f32[8,320]{1,0:T(8,128)}', space=vmem, size = 0x3000, scoped, tag = 'scratch operand']
  %s0 = inlined_call_operand.hbm [shape: f32[8,256], index: 0, kind: input, shape index: {}]
  %s1 = inlined_call_operand.hbm [shape: f32[4,256], index: 1, kind: input, shape index: {}]
  %s2 = inlined_call_operand.hbm [shape: f32[8,256], index: 2, kind: output, shape index: {}]
  %s3 = sld [smem:[#allocation0]]
  $region26: #{tpu_custom_call.1} parent=0
    _
  %s5 = ssub.s32 1, %s3
  %s6 = scalar_select 0, %s5, %s3
  $region1: #{tpu_custom_call.1} parent=0
    #allocation3 [shape = 'u8[8192]{0}', space=vmem, size = 0x2000, scoped, tag = 'input window, operand 0, single buffered']
    #allocation4 [shape = 's32[1]{0}', space=sflag, size = 0x4, scoped, tag = 'scoped memory for tpu_custom_call.1']
    #allocation5 [shape = 's32[1]{0}', space=sflag, size = 0x4, scoped, tag = 'scoped memory for tpu_custom_call.1']
    #allocation6 [shape = 'u8[4096]{0}', space=vmem, size = 0x1000, scoped, tag = 'input window, operand 1, single buffered']
    #allocation7 [shape = 's32[1]{0}', space=sflag, size = 0x4, scoped, tag = 'scoped memory for tpu_custom_call.1']
    #allocation8 [shape = 'u8[8192]{0}', space=vmem, size = 0x2000, scoped, tag = 'output window, operand 0, single buffered']
    %7 = vsyncpa [#allocation4], 0
    %8 = vsyncpa [#allocation7], 0
    %9 = vsyncpa [#allocation5], 0
    // Predicated region
    $region2: #{tpu_custom_call.1} parent=1 // pred_check
      _
    $region3: #{tpu_custom_call.1} parent=1 // pred_check_branch
      %11 = sbr.rel (0) target = $region5
    $region4: #{tpu_custom_call.1} parent=1 // pred_region
      %s13 = ssub.s32 256, 256
      %14 = vsyncadd [#allocation4], %s13
      %s16 = sshll.u32 [#allocation3], 4
      %s17 = int_to_ptr.vmem [resolvable:$true] %s16
      %19 = dma.hbm_to_vmem [thread:$0]  %s0, 256, %s17, [#allocation4]
    $region5: #{tpu_custom_call.1} parent=1 // pred_fallthru
      _
    // Predicated region
    $region6: #{tpu_custom_call.1} parent=1 // pred_check
      _
    $region7: #{tpu_custom_call.1} parent=1 // pred_check_branch
      %21 = sbr.rel (0) target = $region9
    $region8: #{tpu_custom_call.1} parent=1 // pred_region
      %s23 = ssub.s32 128, 128
      %24 = vsyncadd [#allocation7], %s23
      %s26 = sshll.u32 [#allocation6], 4
      %s27 = int_to_ptr.vmem [resolvable:$true] %s26
      %29 = dma.hbm_to_vmem [thread:$0]  %s1, 128, %s27, [#allocation7]
    $region9: #{tpu_custom_call.1} parent=1 // pred_fallthru
      _
    // Predicated region
    $region10: #{tpu_custom_call.1} parent=1 // pred_check
      _
    $region11: #{tpu_custom_call.1} parent=1 // pred_check_branch
      %31 = sbr.rel (0) target = $region13
    $region12: #{tpu_custom_call.1} parent=1 // pred_region
      %32 = dma.done [#allocation4], 256
    $region13: #{tpu_custom_call.1} parent=1 // pred_fallthru
      _
    // Predicated region
    $region14: #{tpu_custom_call.1} parent=1 // pred_check
      _
    $region15: #{tpu_custom_call.1} parent=1 // pred_check_branch
      %34 = sbr.rel (0) target = $region17
    $region16: #{tpu_custom_call.1} parent=1 // pred_region
      %35 = dma.done [#allocation7], 128
    $region17: #{tpu_custom_call.1} parent=1 // pred_fallthru
      _
    %vm36 = vcmask 261120
    %37 = vst.msk [vmem:[#allocation2] sm:$0xff] %vm36, 0.0
    %vm38 = vcmask 523520
    %39 = vst.msk [vmem:[#allocation2 + $0x10] sm:$0xff] %vm38, 0.0
    %v40 = vld [vmem:[#allocation3] sm:$0xff]
    %v41 = vld [vmem:[#allocation3 + $0x8] sm:$0xff]
    %44 = vrot.lane.b32.xlu0 %v40, 32
    %v45 = vpop.permute.xlu0 %44
    %46 = vrot.lane.b32.xlu0 %v41, 32
    %v47 = vpop.permute.xlu0 %46
    %v48 = vsel %vm36, %v45, %v47
    %vm52 = vcmask 1047808
    %53 = vst.msk [vmem:[#allocation2] sm:$0xff] %vm52, %v45
    %54 = vst [vmem:[#allocation2 + $0x8] sm:$0xff] %v48
    %55 = vst.msk [vmem:[#allocation2 + $0x10] sm:$0xff] %vm36, %v47
    %v56 = vld [vmem:[#allocation2] sm:$0xff]
    %v57 = vld [vmem:[#allocation2 + $0x8] sm:$0xff]
    %v58 = vld [vmem:[#allocation2 + $0x10] sm:$0xff]
    %v59 = vld [vmem:[#allocation6] ss:$4 sm:$0x3]
    %v61 = vlaneseq
    %v62 = vshrl.u32 %v61, 7
    %v63 = vsub.s32 0, %v62
    %v64 = vrot.slane %v59, %v63
    %v65 = vlaneseq
    %v66 = vshrl.u32 %v65, 7
    %v67 = vsub.s32 1, %v66
    %v68 = vrot.slane %v59, %v67
    %69 = vrot.lane.b32.xlu0 %v64, 33
    %v70 = vpop.permute.xlu0 %69
    %71 = vrot.lane.b32.xlu0 %v68, 33
    %v72 = vpop.permute.xlu0 %71
    %vm73 = vcmask 269312
    %v74 = vsel %vm73, %v70, %v72
    %v78 = vmul.f32 %v56, %v70
    %v79 = vmul.f32 %v57, %v74
    %v80 = vmul.f32 %v58, %v72
    %84 = vrot.lane.b32.xlu0 %v78, 95
    %v85 = vpop.permute.xlu0 %84
    %86 = vrot.lane.b32.xlu0 %v79, 95
    %v87 = vpop.permute.xlu0 %86
    %88 = vrot.lane.b32.xlu0 %v80, 95
    %v89 = vpop.permute.xlu0 %88
    %vm90 = vcmask 777216
    %v91 = vsel %vm90, %v85, %v87
    %v92 = vsel %vm90, %v87, %v89
    %v95 = vadd.f32 %v40, %v91
    %v96 = vadd.f32 %v41, %v92
    %s97 = scalar_lea.vmem [#allocation6], 1
    %v98 = vld [vmem:[%s97] ss:$4 sm:$0x3]
    %v100 = vlaneseq
    %v101 = vshrl.u32 %v100, 7
    %v102 = vsub.s32 0, %v101
    %v103 = vrot.slane %v98, %v102
    %v104 = vlaneseq
    %v105 = vshrl.u32 %v104, 7
    %v106 = vsub.s32 1, %v105
    %v107 = vrot.slane %v98, %v106
    %108 = vrot.lane.b32.xlu0 %v103, 31
    %v109 = vpop.permute.xlu0 %108
    %110 = vrot.lane.b32.xlu0 %v107, 31
    %v111 = vpop.permute.xlu0 %110
    %vm112 = vcmask 252928
    %v113 = vsel %vm112, %v109, %v111
    %v117 = vmul.f32 %v56, %v109
    %v118 = vmul.f32 %v57, %v113
    %v119 = vmul.f32 %v58, %v111
    %123 = vrot.lane.b32.xlu0 %v117, 97
    %v124 = vpop.permute.xlu0 %123
    %125 = vrot.lane.b32.xlu0 %v118, 97
    %v126 = vpop.permute.xlu0 %125
    %127 = vrot.lane.b32.xlu0 %v119, 97
    %v128 = vpop.permute.xlu0 %127
    %vm129 = vcmask 793600
    %v130 = vsel %vm129, %v124, %v126
    %v131 = vsel %vm129, %v126, %v128
    %v134 = vadd.f32 %v95, %v130
    %v135 = vadd.f32 %v96, %v131
    %s136 = scalar_lea.vmem [#allocation6], 2
    %v137 = vld [vmem:[%s136] ss:$4 sm:$0x3]
    %v139 = vlaneseq
    %v140 = vshrl.u32 %v139, 7
    %v141 = vsub.s32 0, %v140
    %v142 = vrot.slane %v137, %v141
    %v143 = vlaneseq
    %v144 = vshrl.u32 %v143, 7
    %v145 = vsub.s32 1, %v144
    %v146 = vrot.slane %v137, %v145
    %147 = vrot.lane.b32.xlu0 %v142, 34
    %v148 = vpop.permute.xlu0 %147
    %149 = vrot.lane.b32.xlu0 %v146, 34
    %v150 = vpop.permute.xlu0 %149
    %vm151 = vcmask 277504
    %v152 = vsel %vm151, %v148, %v150
    %v156 = vmul.f32 %v56, %v148
    %v157 = vmul.f32 %v57, %v152
    %v158 = vmul.f32 %v58, %v150
    %162 = vrot.lane.b32.xlu0 %v156, 94
    %v163 = vpop.permute.xlu0 %162
    %164 = vrot.lane.b32.xlu0 %v157, 94
    %v165 = vpop.permute.xlu0 %164
    %166 = vrot.lane.b32.xlu0 %v158, 94
    %v167 = vpop.permute.xlu0 %166
    %vm168 = vcmask 769024
    %v169 = vsel %vm168, %v163, %v165
    %v170 = vsel %vm168, %v165, %v167
    %v173 = vadd.f32 %v134, %v169
    %v174 = vadd.f32 %v135, %v170
    %s175 = scalar_lea.vmem [#allocation6], 3
    %v176 = vld [vmem:[%s175] ss:$4 sm:$0x3]
    %v178 = vlaneseq
    %v179 = vshrl.u32 %v178, 7
    %v180 = vsub.s32 0, %v179
    %v181 = vrot.slane %v176, %v180
    %v182 = vlaneseq
    %v183 = vshrl.u32 %v182, 7
    %v184 = vsub.s32 1, %v183
    %v185 = vrot.slane %v176, %v184
    %186 = vrot.lane.b32.xlu0 %v181, 30
    %v187 = vpop.permute.xlu0 %186
    %188 = vrot.lane.b32.xlu0 %v185, 30
    %v189 = vpop.permute.xlu0 %188
    %vm190 = vcmask 244736
    %v191 = vsel %vm190, %v187, %v189
    %v195 = vmul.f32 %v56, %v187
    %v196 = vmul.f32 %v57, %v191
    %v197 = vmul.f32 %v58, %v189
    %201 = vrot.lane.b32.xlu0 %v195, 98
    %v202 = vpop.permute.xlu0 %201
    %203 = vrot.lane.b32.xlu0 %v196, 98
    %v204 = vpop.permute.xlu0 %203
    %205 = vrot.lane.b32.xlu0 %v197, 98
    %v206 = vpop.permute.xlu0 %205
    %vm207 = vcmask 801792
    %v208 = vsel %vm207, %v202, %v204
    %v209 = vsel %vm207, %v204, %v206
    %v212 = vadd.f32 %v173, %v208
    %v213 = vadd.f32 %v174, %v209
    %216 = vrot.lane.b32.xlu0 %v212, 32
    %v217 = vpop.permute.xlu0 %216
    %218 = vrot.lane.b32.xlu0 %v213, 32
    %v219 = vpop.permute.xlu0 %218
    %v220 = vsel %vm36, %v217, %v219
    %224 = vst.msk [vmem:[#allocation2] sm:$0xff] %vm52, %v217
    %225 = vst [vmem:[#allocation2 + $0x8] sm:$0xff] %v220
    %226 = vst.msk [vmem:[#allocation2 + $0x10] sm:$0xff] %vm36, %v219
    %v227 = vld [vmem:[#allocation2] sm:$0xff]
    %v228 = vld [vmem:[#allocation2 + $0x8] sm:$0xff]
    %v229 = vld [vmem:[#allocation2 + $0x10] sm:$0xff]
    %233 = vrot.lane.b32.xlu0 %v227, 80
    %v234 = vpop.permute.xlu0 %233
    %235 = vrot.lane.b32.xlu0 %v228, 80
    %v236 = vpop.permute.xlu0 %235
    %237 = vrot.lane.b32.xlu0 %v229, 80
    %v238 = vpop.permute.xlu0 %237
    %vm239 = vcmask 654336
    %v240 = vsel %vm239, %v234, %v236
    %v241 = vsel %vm239, %v236, %v238
    %v244 = vadd.f32 %v212, %v240
    %v245 = vadd.f32 %v213, %v241
    %246 = vrot.lane.b32.xlu0 %v227, 112
    %v247 = vpop.permute.xlu0 %246
    %248 = vrot.lane.b32.xlu0 %v228, 112
    %v249 = vpop.permute.xlu0 %248
    %250 = vrot.lane.b32.xlu0 %v229, 112
    %v251 = vpop.permute.xlu0 %250
    %vm252 = vcmask 916480
    %v253 = vsel %vm252, %v247, %v249
    %v254 = vsel %vm252, %v249, %v251
    %v257 = vadd.f32 %v244, %v253
    %v258 = vadd.f32 %v245, %v254
    %259 = vrot.lane.b32.xlu0 %v227, 64
    %v260 = vpop.permute.xlu0 %259
    %261 = vrot.lane.b32.xlu0 %v228, 64
    %v262 = vpop.permute.xlu0 %261
    %263 = vrot.lane.b32.xlu0 %v229, 64
    %v264 = vpop.permute.xlu0 %263
    %vm265 = vcmask 523264
    %v266 = vsel %vm265, %v260, %v262
    %v267 = vsel %vm265, %v262, %v264
    %v270 = vadd.f32 %v257, %v266
    %v271 = vadd.f32 %v258, %v267
    %v272 = vadd.f32 %v270, %v227
    %v273 = vadd.f32 %v271, %v228
    %v274 = vmul.f32 %v272, 0.04
    %v275 = vmul.f32 %v273, 0.04
    %276 = vst [vmem:[#allocation8] sm:$0xff] %v274
    %277 = vst [vmem:[#allocation8 + $0x8] sm:$0xff] %v275
    // Predicated region
    $region18: #{tpu_custom_call.1} parent=1 // pred_check
      _
    $region19: #{tpu_custom_call.1} parent=1 // pred_check_branch
      %279 = sbr.rel (0) target = $region21
    $region20: #{tpu_custom_call.1} parent=1 // pred_region
      %s281 = ssub.s32 256, 256
      %282 = vsyncadd [#allocation5], %s281
      %s284 = sshll.u32 [#allocation8], 4
      %s285 = int_to_ptr.vmem [resolvable:$true] %s284
      %287 = dma.vmem_to_hbm [thread:$0]  %s285, 256, %s2, [#allocation5]
    $region21: #{tpu_custom_call.1} parent=1 // pred_fallthru
      _
    // Predicated region
    $region22: #{tpu_custom_call.1} parent=1 // pred_check
      _
    $region23: #{tpu_custom_call.1} parent=1 // pred_check_branch
      %289 = sbr.rel (0) target = $region25
    $region24: #{tpu_custom_call.1} parent=1 // pred_region
      %290 = dma.done [#allocation5], 256
    $region25: #{tpu_custom_call.1} parent=1 // pred_fallthru
      _
    %291 = vsyncpa [#allocation4], 1
    %292 = vsyncpa [#allocation7], 1
    %293 = vsyncpa [#allocation5], 1

</llo_original>
